<compile_context>
chip_gen: v5e
topology: v5e:2x2
jax: 0.10.0
libtpu: 0.0.40
codegen_flags: <defaults>
</compile_context>

<pallas_src>
import functools

import jax
import jax.numpy as jnp
from jax import lax
from jax.experimental import pallas as pl
from jax.experimental.pallas import tpu as pltpu


def _round_up(x, m):
    return ((x + m - 1) // m) * m


def _vmem_capacity_bytes():
    try:
        return int(pltpu.get_tpu_info().vmem_capacity_bytes)
    except Exception:
        return 64 << 20  # conservative fallback (v7x per-TC VMEM)


_VMEM_CAP = _vmem_capacity_bytes()


def _ffn_kernel_multi_k(x_ref, w_ref, b_ref, o_ref, acc_ref):
    """Grid = (M/tm, N/tn, K/tk); K is the reduction ('arbitrary') axis."""
    k = pl.program_id(2)

    @pl.when(k == 0)
    def _():
        acc_ref[...] = jnp.zeros_like(acc_ref)

    # Contract the x tile (tm, tk) with the torch-layout weight tile (tn, tk)
    # along K (trans_b matmul) -> no host-side transpose, no extra HBM pass
    # over W per call.
    acc_ref[...] += lax.dot_general(
        x_ref[...], w_ref[...],
        dimension_numbers=(((1,), (1,)), ((), ())),
        preferred_element_type=jnp.float32,
    )

    @pl.when(k == pl.num_programs(2) - 1)
    def _():
        # Fused bias add + ReLU on the finalize step only; each output tile is
        # written exactly once.
        y = acc_ref[...] + b_ref[...]
        o_ref[...] = jnp.maximum(y, 0.0).astype(o_ref.dtype)


def _ffn_kernel_single_k(x_ref, w_ref, b_ref, o_ref):
    """Specialized path when K fits in one tile: no accumulator scratch and no
    k==0 / k==last predication — single fused matmul + bias + ReLU store."""
    y = lax.dot_general(
        x_ref[...], w_ref[...],
        dimension_numbers=(((1,), (1,)), ((), ())),
        preferred_element_type=jnp.float32,
    ) + b_ref[...]
    o_ref[...] = jnp.maximum(y, 0.0).astype(o_ref.dtype)


@functools.partial(jax.jit, static_argnames=("tm", "tn", "tk"))
def feedforward_network(x, weight, bias, *, tm=512, tn=512, tk=512):
    """Pallas forward pass of FeedForward_Network: relu(x @ weight.T + bias).

    x:      (M, K) activations
    weight: (N, K) torch-style Linear weight (consumed without transposing)
    bias:   (N,)
    """
    M, K = x.shape
    N, K2 = weight.shape
    assert K == K2, (x.shape, weight.shape)
    out_dtype = x.dtype

    # Keep both matmul operands in one dtype.  Note: this downcasts an f32
    # weight when x is bf16 (precision/perf tradeoff flagged in review).
    if weight.dtype != x.dtype:
        weight = weight.astype(x.dtype)
    b2 = bias.reshape(1, N).astype(jnp.float32)

    in_bytes = jnp.dtype(x.dtype).itemsize
    out_bytes = jnp.dtype(out_dtype).itemsize

    # ---- tile selection ----------------------------------------------------
    tm = min(tm, _round_up(M, 8))
    tn = min(tn, _round_up(N, 128))
    tk = min(tk, _round_up(K, 128))

    # v7x has 2 TensorCores sharding the "parallel" grid axes: ensure >= 2
    # parallel tiles whenever the problem is big enough to split.
    if pl.cdiv(M, tm) * pl.cdiv(N, tn) < 2:
        if N > 128:
            tn = _round_up(pl.cdiv(N, 2), 128)
        elif M > 8:
            tm = _round_up(pl.cdiv(M, 2), 8)

    # Shrink the K tile until the double-buffered working set fits comfortably
    # in this generation's VMEM (64 MiB/TC on v7x, 128 MiB on v5e/v6e).
    def _footprint(tm_, tn_, tk_):
        return (2 * (tm_ * tk_ + tk_ * tn_) * in_bytes   # x, W (double-buffered)
                + tm_ * tn_ * 4                           # f32 accumulator
                + 2 * tm_ * tn_ * out_bytes               # output (double-buffered)
                + 2 * tn_ * 4)                            # bias
    budget = int(0.45 * _VMEM_CAP)
    while _footprint(tm, tn, tk) > budget and tk > 128:
        tk = max(128, _round_up(tk // 2, 128))

    Mp, Np, Kp = _round_up(M, tm), _round_up(N, tn), _round_up(K, tk)

    # Zero-pad only when not already tile-aligned (zero rows/cols contribute
    # nothing to the matmul; the padded output region is sliced off).
    x_p = x if (Mp == M and Kp == K) else jnp.pad(x, ((0, Mp - M), (0, Kp - K)))
    w_p = (weight if (Np == N and Kp == K)
           else jnp.pad(weight, ((0, Np - N), (0, Kp - K))))
    b_p = b2 if Np == N else jnp.pad(b2, ((0, 0), (0, Np - N)))

    grid = (Mp // tm, Np // tn, Kp // tk)
    single_k = grid[2] == 1

    cost = pl.CostEstimate(
        flops=2 * M * N * K,
        bytes_accessed=(Mp * Kp + Np * Kp) * in_bytes + Mp * Np * out_bytes + Np * 4,
        transcendentals=0,
    )

    # NOTE: if profiling on v5e shows exposed DMA after the larger tiles, add
    # pipeline_mode=pl.Buffered(3) to the x / W BlockSpecs below.
    out = pl.pallas_call(
        _ffn_kernel_single_k if single_k else _ffn_kernel_multi_k,
        out_shape=jax.ShapeDtypeStruct((Mp, Np), out_dtype),
        grid_spec=pltpu.PrefetchScalarGridSpec(
            num_scalar_prefetch=0,
            grid=grid,
            in_specs=[
                pl.BlockSpec((tm, tk), lambda i, j, k: (i, k)),   # x tile
                pl.BlockSpec((tn, tk), lambda i, j, k: (j, k)),   # W tile (torch layout)
                pl.BlockSpec((1, tn), lambda i, j, k: (0, j)),    # bias tile
            ],
            out_specs=pl.BlockSpec((tm, tn), lambda i, j, k: (i, j)),
            scratch_shapes=([] if single_k
                            else [pltpu.VMEM((tm, tn), jnp.float32)]),
        ),
        compiler_params=pltpu.CompilerParams(
            dimension_semantics=("parallel", "parallel", "arbitrary"),
            vmem_limit_bytes=int(min(0.75 * _VMEM_CAP, 96 << 20)),
        ),
        cost_estimate=cost,
    )(x_p, w_p, b_p)

    if Mp == M and Np == N:
        return out
    return out[:M, :N]


def feedforward_network_ref(x, weight, bias):
    """Pure-JAX reference mirroring the PyTorch forward exactly."""
    return jnp.maximum(x @ weight.T + bias, 0.0)


if __name__ == "__main__":
    key = jax.random.PRNGKey(0)
    kx, kw, kb = jax.random.split(key, 3)

    # --- Case 1: module default init (size=128, W = -I, b = 1) => relu(1-x) --
    SIZE, BATCH = 128, 8
    x = jax.random.normal(kx, (BATCH, SIZE), dtype=jnp.float32)
    weight = -jnp.eye(SIZE, dtype=jnp.float32)   # init_weights(): diag(-1)
    bias = jnp.ones((SIZE,), dtype=jnp.float32)  # init_weights(): fill_(1)

    y = jax.block_until_ready(feedforward_network(x, weight, bias))
    y_ref = feedforward_network_ref(x, weight, bias)
    assert y.shape == (BATCH, SIZE), y.shape
    assert bool(jnp.all(jnp.isfinite(y))), "kernel produced non-finite output"
    assert jnp.allclose(y, y_ref, rtol=1e-5, atol=1e-5), (
        float(jnp.max(jnp.abs(y - y_ref))))

    # --- Case 2: random weights; exercises the multi-K-tile accumulator path
    # and the >=2-parallel-tile (megacore) split at a small size -------------
    SIZE2, BATCH2 = 256, 16
    x2 = jax.random.normal(kx, (BATCH2, SIZE2), dtype=jnp.float32)
    w2 = 0.05 * jax.random.normal(kw, (SIZE2, SIZE2), dtype=jnp.float32)
    b2 = 0.1 * jax.random.normal(kb, (SIZE2,), dtype=jnp.float32)

    y2 = jax.block_until_ready(feedforward_network(x2, w2, b2, tk=128))
    y2_ref = feedforward_network_ref(x2, w2, b2)
    assert y2.shape == (BATCH2, SIZE2), y2.shape
    assert jnp.allclose(y2, y2_ref, rtol=1e-3, atol=1e-3), (
        float(jnp.max(jnp.abs(y2 - y2_ref))))

    print("KERNEL_OK")
</pallas_src>

<mosaic_0001>
module attributes {stable_mosaic.version = 11 : i64} {
  func.func @_ffn_kernel_single_k(%arg0: i32, %arg1: i32, %arg2: i32, %arg3: memref<8x128xf32, #tpu.memory_space<vmem>>, %arg4: memref<128x128xf32, #tpu.memory_space<vmem>>, %arg5: memref<1x128xf32, #tpu.memory_space<vmem>>, %arg6: memref<8x128xf32, #tpu.memory_space<vmem>>) attributes {dimension_semantics = [#tpu.dimension_semantics<parallel>, #tpu.dimension_semantics<parallel>, #tpu.dimension_semantics<arbitrary>], iteration_bounds = array<i64: 1, 1, 1>, scalar_prefetch = 0 : i64, scratch_operands = 0 : i64, tpu.core_type = #tpu.core_type<tc>, window_params = [{transform_indices = @transform_0, window_bounds = array<i64: 8, 128>}, {transform_indices = @transform_1, window_bounds = array<i64: 128, 128>}, {transform_indices = @transform_2, window_bounds = array<i64: 1, 128>}, {transform_indices = @transform_3, window_bounds = array<i64: 8, 128>}]} {
    %c0 = arith.constant 0 : index
    %c0_0 = arith.constant 0 : index
    %0 = vector.load %arg3[%c0, %c0_0] : memref<8x128xf32, #tpu.memory_space<vmem>>, vector<8x128xf32>
    %c0_1 = arith.constant 0 : index
    %c0_2 = arith.constant 0 : index
    %1 = vector.load %arg4[%c0_1, %c0_2] : memref<128x128xf32, #tpu.memory_space<vmem>>, vector<128x128xf32>
    %cst = arith.constant dense<0.000000e+00> : vector<8x128xf32>
    %2 = tpu.matmul %0, %1, %cst {dimension_numbers = #tpu.dot_dimension_numbers<[1], [1], [0], [0], [0, 0, 1, 0], [], []>} : vector<8x128xf32>, vector<128x128xf32>, vector<8x128xf32> -> vector<8x128xf32>
    %c0_3 = arith.constant 0 : index
    %c0_4 = arith.constant 0 : index
    %3 = vector.load %arg5[%c0_3, %c0_4] : memref<1x128xf32, #tpu.memory_space<vmem>>, vector<1x128xf32>
    %4 = vector.broadcast %3 : vector<1x128xf32> to vector<8x128xf32>
    %5 = arith.addf %2, %4 : vector<8x128xf32>
    %cst_5 = arith.constant 0.000000e+00 : f32
    %6 = vector.broadcast %cst_5 : f32 to vector<8x128xf32>
    %7 = arith.maximumf %5, %6 : vector<8x128xf32>
    %c0_6 = arith.constant 0 : index
    %c0_7 = arith.constant 0 : index
    %8 = vector.load %arg6[%c0_6, %c0_7] : memref<8x128xf32, #tpu.memory_space<vmem>>, vector<8x128xf32>
    tpu.vector_store %arg6[%c0_6, %c0_7], %7 {strides = array<i32>} : memref<8x128xf32, #tpu.memory_space<vmem>>, vector<8x128xf32>,
    return
  }
  func.func @transform_0(%arg0: i32, %arg1: i32, %arg2: i32) -> (i32, i32) {
    %c0_i32 = arith.constant 0 : i32
    return %arg0, %arg2 : i32, i32
  }
  func.func @transform_1(%arg0: i32, %arg1: i32, %arg2: i32) -> (i32, i32) {
    %c0_i32 = arith.constant 0 : i32
    return %arg1, %arg2 : i32, i32
  }
  func.func @transform_2(%arg0: i32, %arg1: i32, %arg2: i32) -> (i32, i32) {
    %c0_i32 = arith.constant 0 : i32
    %c0_i32_0 = arith.constant 0 : i32
    return %c0_i32, %arg1 : i32, i32
  }
  func.func @transform_3(%arg0: i32, %arg1: i32, %arg2: i32) -> (i32, i32) {
    %c0_i32 = arith.constant 0 : i32
    return %arg0, %arg1 : i32, i32
  }
}

</mosaic_0001>

<llo_original>
// kernel: feedforward_network.1
$region0: #{feedforward_network.1}
  #allocation0 [shape = 'u32[]', space=smem, size = 0x4, offset = 0x4, fixed_abs, tag = 'smem constant byte address 0x4 - core index']
  #allocation1 [shape = 'u32[72,128]{1,0:T(1,128)}', space=vmem, size = 0x9000, scoped, tag = 'internal scratch']
  %s0 = inlined_call_operand.hbm [shape: f32[8,128], index: 0, kind: input, shape index: {}]
  %s1 = inlined_call_operand.hbm [shape: f32[128,128], index: 1, kind: input, shape index: {}]
  %s2 = inlined_call_operand.vmem [shape: f32[1,128], index: 2, kind: input, shape index: {}]
  %s3 = inlined_call_operand.hbm [shape: f32[8,128], index: 3, kind: output, shape index: {}]
  %s4 = sld [smem:[#allocation0]]
  $region30: #{feedforward_network.1} parent=0
    _
  %s6 = ssub.s32 1, %s4
  %s7 = scalar_select 0, %s6, %s4
  $region1: #{feedforward_network.1} parent=0
    #allocation2 [shape = 'u8[4096]{0}', space=vmem, size = 0x1000, scoped, tag = 'input window, operand 0, single buffered']
    #allocation3 [shape = 's32[1]{0}', space=sflag, size = 0x4, scoped, tag = 'scoped memory for feedforward_network.1']
    #allocation4 [shape = 's32[1]{0}', space=sflag, size = 0x4, scoped, tag = 'scoped memory for feedforward_network.1']
    #allocation5 [shape = 'u8[65536]{0}', space=vmem, size = 0x10000, scoped, tag = 'input window, operand 1, single buffered']
    #allocation6 [shape = 's32[1]{0}', space=sflag, size = 0x4, scoped, tag = 'scoped memory for feedforward_network.1']
    #allocation7 [shape = 'u8[4096]{0}', space=vmem, size = 0x1000, scoped, tag = 'output window, operand 0, single buffered']
    %8 = vsyncpa [#allocation3], 0
    %9 = vsyncpa [#allocation6], 0
    %10 = vsyncpa [#allocation4], 0
    // Predicated region
    $region2: #{feedforward_network.1} parent=1 // pred_check
      _
    $region3: #{feedforward_network.1} parent=1 // pred_check_branch
      %12 = sbr.rel (0) target = $region5
    $region4: #{feedforward_network.1} parent=1 // pred_region
      %14 = vsyncadd [#allocation3], 0
      %s16 = sshll.u32 %s0, 4
      %s17 = int_to_ptr.hbm [resolvable:$true] %s16
      %s18 = sshll.u32 [#allocation2], 4
      %s19 = int_to_ptr.vmem [resolvable:$true] %s18
      %21 = dma.hbm_to_vmem [thread:$0]  %s17, 128, %s19, [#allocation3]
    $region5: #{feedforward_network.1} parent=1 // pred_fallthru
      _
    // Predicated region
    $region6: #{feedforward_network.1} parent=1 // pred_check
      _
    $region7: #{feedforward_network.1} parent=1 // pred_check_branch
      %23 = sbr.rel (0) target = $region9
    $region8: #{feedforward_network.1} parent=1 // pred_region
      %25 = vsyncadd [#allocation6], 0
      %s26 = sshll.u32 %s1, 4
      %s27 = int_to_ptr.hbm [resolvable:$true] %s26
      %s28 = sshll.u32 [#allocation5], 4
      %s29 = int_to_ptr.vmem [resolvable:$true] %s28
      %34 = dma.hbm_to_vmem [thread:$0]  %s27, 2048, %s29, [#allocation6], 128, 128, 8
    $region9: #{feedforward_network.1} parent=1 // pred_fallthru
      _
    // Predicated region
    $region10: #{feedforward_network.1} parent=1 // pred_check
      _
    $region11: #{feedforward_network.1} parent=1 // pred_check_branch
      %36 = sbr.rel (0) target = $region13
    $region12: #{feedforward_network.1} parent=1 // pred_region
      _
    $region13: #{feedforward_network.1} parent=1 // pred_fallthru
      _
    // Predicated region
    $region14: #{feedforward_network.1} parent=1 // pred_check
      _
    $region15: #{feedforward_network.1} parent=1 // pred_check_branch
      %38 = sbr.rel (0) target = $region17
    $region16: #{feedforward_network.1} parent=1 // pred_region
      %40 = dma.done [#allocation3], 128
    $region17: #{feedforward_network.1} parent=1 // pred_fallthru
      _
    // Predicated region
    $region18: #{feedforward_network.1} parent=1 // pred_check
      _
    $region19: #{feedforward_network.1} parent=1 // pred_check_branch
      %42 = sbr.rel (0) target = $region21
    $region20: #{feedforward_network.1} parent=1 // pred_region
      %44 = dma.done [#allocation6], 2048
    $region21: #{feedforward_network.1} parent=1 // pred_fallthru
      _
    %v45 = vld [vmem:[#allocation2] sm:$0xff]
    %v46 = vld [vmem:[#allocation5] sm:$0xff]
    %v47 = vld [vmem:[#allocation5 + $0x8] sm:$0xff]
    %v48 = vld [vmem:[#allocation5 + $0x10] sm:$0xff]
    %v49 = vld [vmem:[#allocation5 + $0x18] sm:$0xff]
    %v50 = vld [vmem:[#allocation5 + $0x20] sm:$0xff]
    %v51 = vld [vmem:[#allocation5 + $0x28] sm:$0xff]
    %v52 = vld [vmem:[#allocation5 + $0x30] sm:$0xff]
    %v53 = vld [vmem:[#allocation5 + $0x38] sm:$0xff]
    %v54 = vld [vmem:[#allocation5 + $0x40] sm:$0xff]
    %v55 = vld [vmem:[#allocation5 + $0x48] sm:$0xff]
    %v56 = vld [vmem:[#allocation5 + $0x50] sm:$0xff]
    %v57 = vld [vmem:[#allocation5 + $0x58] sm:$0xff]
    %v58 = vld [vmem:[#allocation5 + $0x60] sm:$0xff]
    %v59 = vld [vmem:[#allocation5 + $0x68] sm:$0xff]
    %v60 = vld [vmem:[#allocation5 + $0x70] sm:$0xff]
    %v61 = vld [vmem:[#allocation5 + $0x78] sm:$0xff]
    %v62 = vld [vmem:[%s2] sm:$0x1]
    %v64 = vperm.slane %v62, 0
    %66 = vmatpush.xpose.msra.mxu0 %v61
    %67 = vmatpush.xpose.msra.mxu0 %v60
    %68 = vmatpush.xpose.msra.mxu0 %v59
    %69 = vmatpush.xpose.msra.mxu0 %v58
    %70 = vmatpush.xpose.msra.mxu0 %v57
    %71 = vmatpush.xpose.msra.mxu0 %v56
    %72 = vmatpush.xpose.msra.mxu0 %v55
    %73 = vmatpush.xpose.msra.mxu0 %v54
    %74 = vmatpush.xpose.msra.mxu0 %v53
    %75 = vmatpush.xpose.msra.mxu0 %v52
    %76 = vmatpush.xpose.msra.mxu0 %v51
    %77 = vmatpush.xpose.msra.mxu0 %v50
    %78 = vmatpush.xpose.msra.mxu0 %v49
    %79 = vmatpush.xpose.msra.mxu0 %v48
    %80 = vmatpush.xpose.msra.mxu0 %v47
    %81 = vmatpush.xpose.msra.mxu0 %v46
    %82 = vmatmul.f32.gmra.mxu0 %v45
    %v83 = vpop.f32.mrf.mxu0
    %v84 = vadd.f32 %v64, %v83
    %85 = vdwg.mxu0
    %v86 = vmax.f32 %v84, 0.0
    %87 = vst [vmem:[#allocation7] sm:$0xff] %v86
    // Predicated region
    $region22: #{feedforward_network.1} parent=1 // pred_check
      _
    $region23: #{feedforward_network.1} parent=1 // pred_check_branch
      %89 = sbr.rel (0) target = $region25
    $region24: #{feedforward_network.1} parent=1 // pred_region
      %91 = vsyncadd [#allocation4], 0
      %s93 = sshll.u32 [#allocation7], 4
      %s94 = int_to_ptr.vmem [resolvable:$true] %s93
      %s95 = sshll.u32 %s3, 4
      %s96 = int_to_ptr.hbm [resolvable:$true] %s95
      %98 = dma.vmem_to_hbm [thread:$0]  %s94, 128, %s96, [#allocation4]
    $region25: #{feedforward_network.1} parent=1 // pred_fallthru
      _
    // Predicated region
    $region26: #{feedforward_network.1} parent=1 // pred_check
      _
    $region27: #{feedforward_network.1} parent=1 // pred_check_branch
      %100 = sbr.rel (0) target = $region29
    $region28: #{feedforward_network.1} parent=1 // pred_region
      %102 = dma.done [#allocation4], 128
    $region29: #{feedforward_network.1} parent=1 // pred_fallthru
      _
    %103 = vsyncpa [#allocation3], 1
    %104 = vsyncpa [#allocation6], 1
    %105 = vsyncpa [#allocation4], 1

</llo_original>
